<compile_context>
chip_gen: v7x
topology: tpu7x:2x2x1
jax: 0.10.0
libtpu: 0.0.40
codegen_flags: <defaults>
</compile_context>

<pallas_src>
import jax
import jax.numpy as jnp
from jax.experimental import pallas as pl
from jax.experimental.pallas import tpu as pltpu


def _round_up(x, m):
    return ((x + m - 1) // m) * m


def ctt_kernel(t1_ref, t2_ref,
               w1_ref, b1_ref,
               w2_ref, b2_ref,
               wc_ref, bc_ref,
               out_ref):
    def summarize(x):
        # bf16 x bf16 -> f32 on the MXU; bias-add / ReLU in f32 on the VPU.
        h = jnp.dot(x.astype(jnp.bfloat16), w1_ref[...],
                    preferred_element_type=jnp.float32) + b1_ref[...]
        h = jnp.maximum(h, 0.0).astype(jnp.bfloat16)
        h = jnp.dot(h, w2_ref[...],
                    preferred_element_type=jnp.float32) + b2_ref[...]
        return jnp.maximum(h, 0.0)                       # (tb, H1) f32

    diff = jnp.abs(summarize(t1_ref[...]) - summarize(t2_ref[...]))   # (tb, H1)

    # N=1 classifier: VPU multiply + lane reduction instead of a 1-lane MXU matmul.
    # bc is a scalar read from SMEM (rides the scalar slot).
    logits = jnp.sum(diff * wc_ref[...], axis=-1, keepdims=True) + bc_ref[0, 0]
    out_ref[...] = jax.nn.sigmoid(logits).astype(out_ref.dtype)        # (tb, 1)


def ctt_forward(t1, t2, params, *, tb=None):
    """sigmoid(classifier(|f(t1) - f(t2)|)), shape (B, 1)."""
    B, D = t1.shape
    H0 = params["w1"].shape[1]
    H1 = params["w2"].shape[1]

    if tb is None:
        # Target ~8 grid steps (>=2 keeps both v7x TensorCores busy) while keeping
        # each step big enough to amortize the ~0.35us fixed per-step overhead.
        # Cap at 4096 so f32 temporaries stay far below v5e's 16 MiB scoped VMEM.
        tb = min(4096, max(256, _round_up(pl.cdiv(B, 8), 128)))
        tb = min(tb, _round_up(max(B, 1), 128))   # don't over-pad tiny batches
    else:
        tb = max(8, _round_up(tb, 8))
    b_pad = _round_up(B, tb)

    if b_pad != B:
        pad = ((0, b_pad - B), (0, 0))
        t1 = jnp.pad(t1, pad)
        t2 = jnp.pad(t2, pad)

    # Weights in bf16 (MXU-native, VMEM resident); biases / classifier row in f32.
    w1 = params["w1"].astype(jnp.bfloat16)
    w2 = params["w2"].astype(jnp.bfloat16)
    b1 = params["b1"].reshape(1, H0).astype(jnp.float32)
    b2 = params["b2"].reshape(1, H1).astype(jnp.float32)
    wc = params["wc"].reshape(1, H1).astype(jnp.float32)
    bc = params["bc"].reshape(1, 1).astype(jnp.float32)

    grid = (b_pad // tb,)
    in_specs = [
        pl.BlockSpec((tb, D), lambda i: (i, 0)),             # t1 tile
        pl.BlockSpec((tb, D), lambda i: (i, 0)),             # t2 tile
        pl.BlockSpec((D, H0), lambda i: (0, 0)),              # w1 (VMEM resident)
        pl.BlockSpec((1, H0), lambda i: (0, 0)),              # b1
        pl.BlockSpec((H0, H1), lambda i: (0, 0)),             # w2 (resident)
        pl.BlockSpec((1, H1), lambda i: (0, 0)),              # b2
        pl.BlockSpec((1, H1), lambda i: (0, 0)),              # wc row
        pl.BlockSpec(memory_space=pltpu.MemorySpace.SMEM),    # bc scalar
    ]
    # (tb, 1) output block: 4 B/row writeback (128x less HBM traffic than the old
    # lane-broadcast store); masked vst cost hides under the input DMA at large tb.
    out_spec = pl.BlockSpec((tb, 1), lambda i: (i, 0))

    out = pl.pallas_call(
        ctt_kernel,
        out_shape=jax.ShapeDtypeStruct((b_pad, 1), jnp.float32),
        grid=grid,
        in_specs=in_specs,
        out_specs=out_spec,
        compiler_params=pltpu.CompilerParams(
            dimension_semantics=("parallel",)),
    )(t1, t2, w1, b1, w2, b2, wc, bc)
    return out[:B]


def init_params(key, input_dimension, hidden_dimensions):
    h0, h1 = hidden_dimensions
    ks = jax.random.split(key, 6)
    # Deterministic small-scale init (synthetic; not matching torch init exactly).
    w1 = jax.random.normal(ks[0], (input_dimension, h0), jnp.float32) * 0.1
    b1 = jax.random.normal(ks[1], (1, h0), jnp.float32) * 0.1
    w2 = jax.random.normal(ks[2], (h0, h1), jnp.float32) * 0.1
    b2 = jax.random.normal(ks[3], (1, h1), jnp.float32) * 0.1
    wc = jax.random.normal(ks[4], (h1, 1), jnp.float32) * 0.1
    bc = jax.random.normal(ks[5], (1, 1), jnp.float32) * 0.1
    return {"w1": w1, "b1": b1, "w2": w2, "b2": b2, "wc": wc, "bc": bc}


def reference_forward(t1, t2, p):
    """Pure-JAX reference replicating the kernel's bf16 quantization points."""
    w1 = p["w1"].astype(jnp.bfloat16)
    w2 = p["w2"].astype(jnp.bfloat16)

    def summarize(x):
        h = jnp.dot(x.astype(jnp.bfloat16), w1,
                    preferred_element_type=jnp.float32) + p["b1"]
        h = jnp.maximum(h, 0.0).astype(jnp.bfloat16)
        h = jnp.dot(h, w2, preferred_element_type=jnp.float32) + p["b2"]
        return jnp.maximum(h, 0.0)

    diff = jnp.abs(summarize(t1) - summarize(t2))
    logits = jnp.sum(diff * p["wc"].reshape(1, -1), axis=-1, keepdims=True) \
        + p["bc"].reshape(1, 1)
    return jax.nn.sigmoid(logits)


if __name__ == "__main__":
    key = jax.random.PRNGKey(0)
    k_params, k_t1, k_t2 = jax.random.split(key, 3)

    batch = 8
    input_dimension = 32
    hidden_dimensions = (64, 32)

    params = init_params(k_params, input_dimension, hidden_dimensions)
    # bf16 activations in HBM halve the kernel's input-read traffic.
    t1 = jax.random.normal(k_t1, (batch, input_dimension), jnp.float32).astype(jnp.bfloat16)
    t2 = jax.random.normal(k_t2, (batch, input_dimension), jnp.float32).astype(jnp.bfloat16)

    out = jax.block_until_ready(ctt_forward(t1, t2, params))
    ref = reference_forward(t1, t2, params)
    assert out.shape == (batch, 1)
    assert jnp.allclose(out, ref, atol=1e-4, rtol=1e-4), "mismatch vs reference (single tile)"

    # Exercise the multi-step grid path (padding + parallel batch tiles).
    B2 = 300
    k1, k2 = jax.random.split(jax.random.PRNGKey(1))
    u1 = jax.random.normal(k1, (B2, input_dimension), jnp.float32).astype(jnp.bfloat16)
    u2 = jax.random.normal(k2, (B2, input_dimension), jnp.float32).astype(jnp.bfloat16)
    out2 = jax.block_until_ready(ctt_forward(u1, u2, params, tb=128))
    ref2 = reference_forward(u1, u2, params)
    assert out2.shape == (B2, 1)
    assert jnp.allclose(out2, ref2, atol=1e-4, rtol=1e-4), "mismatch vs reference (multi tile)"

    print("KERNEL_OK")
</pallas_src>

<mosaic_0001>
module attributes {stable_mosaic.version = 11 : i64} {
  func.func @ctt_kernel(%arg0: i32, %arg1: memref<128x32xbf16, #tpu.memory_space<vmem>>, %arg2: memref<128x32xbf16, #tpu.memory_space<vmem>>, %arg3: memref<32x64xbf16, #tpu.memory_space<vmem>>, %arg4: memref<1x64xf32, #tpu.memory_space<vmem>>, %arg5: memref<64x32xbf16, #tpu.memory_space<vmem>>, %arg6: memref<1x32xf32, #tpu.memory_space<vmem>>, %arg7: memref<1x32xf32, #tpu.memory_space<vmem>>, %arg8: memref<1x1xf32, #tpu.memory_space<smem>>, %arg9: memref<128x1xf32, #tpu.memory_space<vmem>>) attributes {dimension_semantics = [#tpu.dimension_semantics<parallel>], iteration_bounds = array<i64: 1>, scalar_prefetch = 0 : i64, scratch_operands = 0 : i64, tpu.core_type = #tpu.core_type<tc>, window_params = [{transform_indices = @transform_0, window_bounds = array<i64: 128, 32>}, {transform_indices = @transform_1, window_bounds = array<i64: 128, 32>}, {pipeline_mode = #tpu.pipeline_mode<synchronous>, transform_indices = @transform_2, window_bounds = array<i64: 32, 64>}, {pipeline_mode = #tpu.pipeline_mode<synchronous>, transform_indices = @transform_3, window_bounds = array<i64: 1, 64>}, {pipeline_mode = #tpu.pipeline_mode<synchronous>, transform_indices = @transform_4, window_bounds = array<i64: 64, 32>}, {pipeline_mode = #tpu.pipeline_mode<synchronous>, transform_indices = @transform_5, window_bounds = array<i64: 1, 32>}, {pipeline_mode = #tpu.pipeline_mode<synchronous>, transform_indices = @transform_6, window_bounds = array<i64: 1, 32>}, {transform_indices = @transform_7, window_bounds = array<i64: 1, 1>}, {transform_indices = @transform_8, window_bounds = array<i64: 128, 1>}]} {
    %c0 = arith.constant 0 : index
    %c0_0 = arith.constant 0 : index
    %0 = vector.load %arg1[%c0, %c0_0] : memref<128x32xbf16, #tpu.memory_space<vmem>>, vector<128x32xbf16>
    %c0_1 = arith.constant 0 : index
    %c0_2 = arith.constant 0 : index
    %1 = vector.load %arg3[%c0_1, %c0_2] : memref<32x64xbf16, #tpu.memory_space<vmem>>, vector<32x64xbf16>
    %cst = arith.constant dense<0.000000e+00> : vector<128x64xf32>
    %2 = tpu.matmul %0, %1, %cst {dimension_numbers = #tpu.dot_dimension_numbers<[1], [0], [0], [1], [0, 0, 1, 1], [], []>} : vector<128x32xbf16>, vector<32x64xbf16>, vector<128x64xf32> -> vector<128x64xf32>
    %c0_3 = arith.constant 0 : index
    %c0_4 = arith.constant 0 : index
    %3 = vector.load %arg4[%c0_3, %c0_4] : memref<1x64xf32, #tpu.memory_space<vmem>>, vector<1x64xf32>
    %4 = vector.broadcast %3 : vector<1x64xf32> to vector<128x64xf32>
    %5 = arith.addf %2, %4 : vector<128x64xf32>
    %cst_5 = arith.constant 0.000000e+00 : f32
    %6 = vector.broadcast %cst_5 : f32 to vector<128x64xf32>
    %7 = arith.maximumf %5, %6 : vector<128x64xf32>
    %8 = arith.truncf %7 : vector<128x64xf32> to vector<128x64xbf16>
    %c0_6 = arith.constant 0 : index
    %c0_7 = arith.constant 0 : index
    %9 = vector.load %arg5[%c0_6, %c0_7] : memref<64x32xbf16, #tpu.memory_space<vmem>>, vector<64x32xbf16>
    %cst_8 = arith.constant dense<0.000000e+00> : vector<128x32xf32>
    %10 = tpu.matmul %8, %9, %cst_8 {dimension_numbers = #tpu.dot_dimension_numbers<[1], [0], [0], [1], [0, 0, 1, 1], [], []>} : vector<128x64xbf16>, vector<64x32xbf16>, vector<128x32xf32> -> vector<128x32xf32>
    %c0_9 = arith.constant 0 : index
    %c0_10 = arith.constant 0 : index
    %11 = vector.load %arg6[%c0_9, %c0_10] : memref<1x32xf32, #tpu.memory_space<vmem>>, vector<1x32xf32>
    %12 = vector.broadcast %11 : vector<1x32xf32> to vector<128x32xf32>
    %13 = arith.addf %10, %12 : vector<128x32xf32>
    %cst_11 = arith.constant 0.000000e+00 : f32
    %14 = vector.broadcast %cst_11 : f32 to vector<128x32xf32>
    %15 = arith.maximumf %13, %14 : vector<128x32xf32>
    %c0_12 = arith.constant 0 : index
    %c0_13 = arith.constant 0 : index
    %16 = vector.load %arg2[%c0_12, %c0_13] : memref<128x32xbf16, #tpu.memory_space<vmem>>, vector<128x32xbf16>
    %c0_14 = arith.constant 0 : index
    %c0_15 = arith.constant 0 : index
    %17 = vector.load %arg3[%c0_14, %c0_15] : memref<32x64xbf16, #tpu.memory_space<vmem>>, vector<32x64xbf16>
    %cst_16 = arith.constant dense<0.000000e+00> : vector<128x64xf32>
    %18 = tpu.matmul %16, %17, %cst_16 {dimension_numbers = #tpu.dot_dimension_numbers<[1], [0], [0], [1], [0, 0, 1, 1], [], []>} : vector<128x32xbf16>, vector<32x64xbf16>, vector<128x64xf32> -> vector<128x64xf32>
    %c0_17 = arith.constant 0 : index
    %c0_18 = arith.constant 0 : index
    %19 = vector.load %arg4[%c0_17, %c0_18] : memref<1x64xf32, #tpu.memory_space<vmem>>, vector<1x64xf32>
    %20 = vector.broadcast %19 : vector<1x64xf32> to vector<128x64xf32>
    %21 = arith.addf %18, %20 : vector<128x64xf32>
    %cst_19 = arith.constant 0.000000e+00 : f32
    %22 = vector.broadcast %cst_19 : f32 to vector<128x64xf32>
    %23 = arith.maximumf %21, %22 : vector<128x64xf32>
    %24 = arith.truncf %23 : vector<128x64xf32> to vector<128x64xbf16>
    %c0_20 = arith.constant 0 : index
    %c0_21 = arith.constant 0 : index
    %25 = vector.load %arg5[%c0_20, %c0_21] : memref<64x32xbf16, #tpu.memory_space<vmem>>, vector<64x32xbf16>
    %cst_22 = arith.constant dense<0.000000e+00> : vector<128x32xf32>
    %26 = tpu.matmul %24, %25, %cst_22 {dimension_numbers = #tpu.dot_dimension_numbers<[1], [0], [0], [1], [0, 0, 1, 1], [], []>} : vector<128x64xbf16>, vector<64x32xbf16>, vector<128x32xf32> -> vector<128x32xf32>
    %c0_23 = arith.constant 0 : index
    %c0_24 = arith.constant 0 : index
    %27 = vector.load %arg6[%c0_23, %c0_24] : memref<1x32xf32, #tpu.memory_space<vmem>>, vector<1x32xf32>
    %28 = vector.broadcast %27 : vector<1x32xf32> to vector<128x32xf32>
    %29 = arith.addf %26, %28 : vector<128x32xf32>
    %cst_25 = arith.constant 0.000000e+00 : f32
    %30 = vector.broadcast %cst_25 : f32 to vector<128x32xf32>
    %31 = arith.maximumf %29, %30 : vector<128x32xf32>
    %32 = arith.subf %15, %31 : vector<128x32xf32>
    %33 = math.absf %32 : vector<128x32xf32>
    %c0_26 = arith.constant 0 : index
    %c0_27 = arith.constant 0 : index
    %34 = vector.load %arg7[%c0_26, %c0_27] : memref<1x32xf32, #tpu.memory_space<vmem>>, vector<1x32xf32>
    %35 = vector.broadcast %34 : vector<1x32xf32> to vector<128x32xf32>
    %36 = arith.mulf %33, %35 : vector<128x32xf32>
    %cst_28 = arith.constant dense<0.000000e+00> : vector<128xf32>
    %37 = vector.multi_reduction <add>, %36, %cst_28 [1] : vector<128x32xf32> to vector<128xf32>
    %38 = vector.shape_cast %37 : vector<128xf32> to vector<128x1xf32>
    %c0_29 = arith.constant 0 : index
    %c0_30 = arith.constant 0 : index
    %39 = memref.load %arg8[%c0_29, %c0_30] : memref<1x1xf32, #tpu.memory_space<smem>>
    %40 = vector.broadcast %39 : f32 to vector<128x1xf32>
    %41 = arith.addf %38, %40 : vector<128x1xf32>
    %42 = arith.negf %41 : vector<128x1xf32>
    %43 = math.exp %42 : vector<128x1xf32>
    %cst_31 = arith.constant 1.000000e+00 : f32
    %44 = vector.broadcast %cst_31 : f32 to vector<128x1xf32>
    %45 = arith.addf %44, %43 : vector<128x1xf32>
    %46 = arith.divf %44, %45 : vector<128x1xf32>
    %c0_32 = arith.constant 0 : index
    %c0_33 = arith.constant 0 : index
    %47 = vector.load %arg9[%c0_32, %c0_33] : memref<128x1xf32, #tpu.memory_space<vmem>>, vector<128x1xf32>
    tpu.vector_store %arg9[%c0_32, %c0_33], %46 {strides = array<i32>} : memref<128x1xf32, #tpu.memory_space<vmem>>, vector<128x1xf32>,
    return
  }
  func.func @transform_0(%arg0: i32) -> (i32, i32) {
    %c0_i32 = arith.constant 0 : i32
    %c0_i32_0 = arith.constant 0 : i32
    return %arg0, %c0_i32 : i32, i32
  }
  func.func @transform_1(%arg0: i32) -> (i32, i32) {
    %c0_i32 = arith.constant 0 : i32
    %c0_i32_0 = arith.constant 0 : i32
    return %arg0, %c0_i32 : i32, i32
  }
  func.func @transform_2(%arg0: i32) -> (i32, i32) {
    %c0_i32 = arith.constant 0 : i32
    %c0_i32_0 = arith.constant 0 : i32
    %c0_i32_1 = arith.constant 0 : i32
    return %c0_i32, %c0_i32_0 : i32, i32
  }
  func.func @transform_3(%arg0: i32) -> (i32, i32) {
    %c0_i32 = arith.constant 0 : i32
    %c0_i32_0 = arith.constant 0 : i32
    %c0_i32_1 = arith.constant 0 : i32
    return %c0_i32, %c0_i32_0 : i32, i32
  }
  func.func @transform_4(%arg0: i32) -> (i32, i32) {
    %c0_i32 = arith.constant 0 : i32
    %c0_i32_0 = arith.constant 0 : i32
    %c0_i32_1 = arith.constant 0 : i32
    return %c0_i32, %c0_i32_0 : i32, i32
  }
  func.func @transform_5(%arg0: i32) -> (i32, i32) {
    %c0_i32 = arith.constant 0 : i32
    %c0_i32_0 = arith.constant 0 : i32
    %c0_i32_1 = arith.constant 0 : i32
    return %c0_i32, %c0_i32_0 : i32, i32
  }
  func.func @transform_6(%arg0: i32) -> (i32, i32) {
    %c0_i32 = arith.constant 0 : i32
    %c0_i32_0 = arith.constant 0 : i32
    %c0_i32_1 = arith.constant 0 : i32
    return %c0_i32, %c0_i32_0 : i32, i32
  }
  func.func @transform_7(%arg0: i32) -> (i32, i32) {
    %c0_i32 = arith.constant 0 : i32
    %c0_i32_0 = arith.constant 0 : i32
    %c0_i32_1 = arith.constant 0 : i32
    return %c0_i32, %c0_i32_0 : i32, i32
  }
  func.func @transform_8(%arg0: i32) -> (i32, i32) {
    %c0_i32 = arith.constant 0 : i32
    %c0_i32_0 = arith.constant 0 : i32
    return %arg0, %c0_i32 : i32, i32
  }
}

</mosaic_0001>

<llo_original>
// kernel: tpu_custom_call.1
$region0: #{tpu_custom_call.1}
  #allocation0 [shape = 'u32[]', space=smem, size = 0x4, offset = 0x4, fixed_abs, tag = 'smem constant byte address 0x4 - core index']
  #allocation1 [shape = 'u32[144,128]{1,0:T(1,128)}', space=vmem, size = 0x12000, scoped, tag = 'internal scratch']
  #allocation2 [shape = 'f32[1,1]{1,0:T(1,128)S(6)}', space=smem, size = 0x200, scoped, tag = 'scoped memory for tpu_custom_call.1']
  %s0 = inlined_call_operand.vmem [shape: bf16[128,32], index: 0, kind: input, shape index: {}]
  %s1 = inlined_call_operand.vmem [shape: bf16[128,32], index: 1, kind: input, shape index: {}]
  %s2 = inlined_call_operand.vmem [shape: bf16[32,64], index: 2, kind: input, shape index: {}]
  %s3 = inlined_call_operand.vmem [shape: f32[1,64], index: 3, kind: input, shape index: {}]
  %s4 = inlined_call_operand.vmem [shape: bf16[64,32], index: 4, kind: input, shape index: {}]
  %s5 = inlined_call_operand.vmem [shape: f32[1,32], index: 5, kind: input, shape index: {}]
  %s6 = inlined_call_operand.vmem [shape: f32[1,32], index: 6, kind: input, shape index: {}]
  %s7 = inlined_call_operand.<no memory space> [shape: f32[1,1], index: 7, kind: input, shape index: {}]
  %s8 = inlined_call_operand.vmem [shape: f32[128,1], index: 8, kind: output, shape index: {}]
  %s9 = sld [smem:[#allocation0]]
  $region42: #{tpu_custom_call.1} parent=0
    _
  %s11 = ssub.s32 1, %s9
  %s12 = scalar_select 0, %s11, %s9
  %13 = sst [smem:[#allocation2]] %s7
  // Predicated region
  $region2: #{tpu_custom_call.1} parent=0 // pred_check
    _
  $region3: #{tpu_custom_call.1} parent=0 // pred_check_branch
    %15 = sbr.rel (0) target = $region5
  $region4: #{tpu_custom_call.1} parent=0 // pred_region
    _
  $region5: #{tpu_custom_call.1} parent=0 // pred_fallthru
    _
  // Predicated region
  $region6: #{tpu_custom_call.1} parent=0 // pred_check
    _
  $region7: #{tpu_custom_call.1} parent=0 // pred_check_branch
    %17 = sbr.rel (0) target = $region9
  $region8: #{tpu_custom_call.1} parent=0 // pred_region
    _
  $region9: #{tpu_custom_call.1} parent=0 // pred_fallthru
    _
  // Predicated region
  $region10: #{tpu_custom_call.1} parent=0 // pred_check
    _
  $region11: #{tpu_custom_call.1} parent=0 // pred_check_branch
    %19 = sbr.rel (0) target = $region13
  $region12: #{tpu_custom_call.1} parent=0 // pred_region
    _
  $region13: #{tpu_custom_call.1} parent=0 // pred_fallthru
    _
  // Predicated region
  $region14: #{tpu_custom_call.1} parent=0 // pred_check
    _
  $region15: #{tpu_custom_call.1} parent=0 // pred_check_branch
    %21 = sbr.rel (0) target = $region17
  $region16: #{tpu_custom_call.1} parent=0 // pred_region
    _
  $region17: #{tpu_custom_call.1} parent=0 // pred_fallthru
    _
  // Predicated region
  $region18: #{tpu_custom_call.1} parent=0 // pred_check
    _
  $region19: #{tpu_custom_call.1} parent=0 // pred_check_branch
    %23 = sbr.rel (0) target = $region21
  $region20: #{tpu_custom_call.1} parent=0 // pred_region
    _
  $region21: #{tpu_custom_call.1} parent=0 // pred_fallthru
    _
  // Predicated region
  $region22: #{tpu_custom_call.1} parent=0 // pred_check
    _
  $region23: #{tpu_custom_call.1} parent=0 // pred_check_branch
    %25 = sbr.rel (0) target = $region25
  $region24: #{tpu_custom_call.1} parent=0 // pred_region
    _
  $region25: #{tpu_custom_call.1} parent=0 // pred_fallthru
    _
  // Predicated region
  $region26: #{tpu_custom_call.1} parent=0 // pred_check
    _
  $region27: #{tpu_custom_call.1} parent=0 // pred_check_branch
    %27 = sbr.rel (0) target = $region29
  $region28: #{tpu_custom_call.1} parent=0 // pred_region
    _
  $region29: #{tpu_custom_call.1} parent=0 // pred_fallthru
    _
  // Predicated region
  $region30: #{tpu_custom_call.1} parent=0 // pred_check
    _
  $region31: #{tpu_custom_call.1} parent=0 // pred_check_branch
    %29 = sbr.rel (0) target = $region33
  $region32: #{tpu_custom_call.1} parent=0 // pred_region
    _
  $region33: #{tpu_custom_call.1} parent=0 // pred_fallthru
    _
  %v31 = vld [vmem:[%s0] sm:$0xf]
  %v32 = vld [vmem:[%s0 + $0x4] sm:$0xf]
  %v33 = vld [vmem:[%s0 + $0x8] sm:$0xf]
  %v34 = vld [vmem:[%s0 + $0xc] sm:$0xf]
  %v35 = vld [vmem:[%s0 + $0x10] sm:$0xf]
  %v36 = vld [vmem:[%s0 + $0x14] sm:$0xf]
  %v37 = vld [vmem:[%s0 + $0x18] sm:$0xf]
  %v38 = vld [vmem:[%s0 + $0x1c] sm:$0xf]
  %v39 = vld [vmem:[%s0 + $0x20] sm:$0xf]
  %v40 = vld [vmem:[%s0 + $0x24] sm:$0xf]
  %v41 = vld [vmem:[%s0 + $0x28] sm:$0xf]
  %v42 = vld [vmem:[%s0 + $0x2c] sm:$0xf]
  %v43 = vld [vmem:[%s0 + $0x30] sm:$0xf]
  %v44 = vld [vmem:[%s0 + $0x34] sm:$0xf]
  %v45 = vld [vmem:[%s0 + $0x38] sm:$0xf]
  %v46 = vld [vmem:[%s0 + $0x3c] sm:$0xf]
  %v47 = vld [vmem:[%s2] sm:$0xf]
  %v48 = vld [vmem:[%s2 + $0x4] sm:$0xf]
  %v49 = vld [vmem:[%s2 + $0x8] sm:$0xf]
  %v50 = vld [vmem:[%s2 + $0xc] sm:$0xf]
  %v51 = vld [vmem:[%s3] sm:$0x1]
  %v53 = vlaneseq
  %v54 = vshrl.u32 %v53, 7
  %v55 = vsub.s32 0, %v54
  %v56 = vrot.slane %v51, %v55
  %v74 = vunpack.c.l.b16 %v31
  %v75 = vunpack.c.l.b16 %v32
  %v76 = vunpack.c.l.b16 %v33
  %v77 = vunpack.c.l.b16 %v34
  %v78 = vunpack.c.l.b16 %v35
  %v79 = vunpack.c.l.b16 %v36
  %v80 = vunpack.c.l.b16 %v37
  %v81 = vunpack.c.l.b16 %v38
  %v82 = vunpack.c.l.b16 %v39
  %v83 = vunpack.c.l.b16 %v40
  %v84 = vunpack.c.l.b16 %v41
  %v85 = vunpack.c.l.b16 %v42
  %v86 = vunpack.c.l.b16 %v43
  %v87 = vunpack.c.l.b16 %v44
  %v88 = vunpack.c.l.b16 %v45
  %v89 = vunpack.c.l.b16 %v46
  %v90 = vpack.c.b16 %v75, %v74
  %v91 = vpack.c.b16 %v77, %v76
  %v92 = vpack.c.b16 %v79, %v78
  %v93 = vpack.c.b16 %v81, %v80
  %v94 = vpack.c.b16 %v83, %v82
  %v95 = vpack.c.b16 %v85, %v84
  %v96 = vpack.c.b16 %v87, %v86
  %v97 = vpack.c.b16 %v89, %v88
  %v102 = vunpack.c.l.b16 %v47
  %v103 = vunpack.c.l.b16 %v48
  %v104 = vunpack.c.l.b16 %v49
  %v105 = vunpack.c.l.b16 %v50
  %v106 = vpack.c.b16 %v103, %v102
  %v107 = vpack.c.b16 %v105, %v104
  %vm110 = vcmask 261120
  %v112 = vsel %vm110, %v90, 0
  %v115 = vsel %vm110, %v91, 0
  %v118 = vsel %vm110, %v92, 0
  %v121 = vsel %vm110, %v93, 0
  %v124 = vsel %vm110, %v94, 0
  %v127 = vsel %vm110, %v95, 0
  %v130 = vsel %vm110, %v96, 0
  %v133 = vsel %vm110, %v97, 0
  %135 = vmatprep.subr.bf16.mxu0 0
  %136 = vmatpush1.bf16.msra.mxu0 %v106
  %137 = vmatprep.subr.bf16.mxu0 0
  %138 = vmatpush1.bf16.msra.mxu0 %v107
  %139 = vmatprep.subr.bf16.mxu0 0
  %140 = vmatpush1.bf16.msra.mxu0 0
  %141 = vmatprep.subr.bf16.mxu0 0
  %142 = vmatpush1.bf16.msra.mxu0 0
  %143 = vmatprep.subr.bf16.mxu0 0
  %144 = vmatpush1.bf16.msra.mxu0 0
  %145 = vmatprep.subr.bf16.mxu0 0
  %146 = vmatpush1.bf16.msra.mxu0 0
  %147 = vmatprep.subr.bf16.mxu0 0
  %148 = vmatpush1.bf16.msra.mxu0 0
  %149 = vmatprep.subr.bf16.mxu0 0
  %150 = vmatpush1.bf16.msra.mxu0 0
  %151 = vmatprep.subr.bf16.mxu0 0
  %152 = vmatpush1.bf16.msra.mxu0 0
  %153 = vmatprep.subr.bf16.mxu0 0
  %154 = vmatpush1.bf16.msra.mxu0 0
  %155 = vmatprep.subr.bf16.mxu0 0
  %156 = vmatpush1.bf16.msra.mxu0 0
  %157 = vmatprep.subr.bf16.mxu0 0
  %158 = vmatpush1.bf16.msra.mxu0 0
  %159 = vmatprep.subr.bf16.mxu0 0
  %160 = vmatpush1.bf16.msra.mxu0 0
  %161 = vmatprep.subr.bf16.mxu0 0
  %162 = vmatpush1.bf16.msra.mxu0 0
  %163 = vmatprep.subr.bf16.mxu0 0
  %164 = vmatpush1.bf16.msra.mxu0 0
  %165 = vmatprep.subr.bf16.mxu0 0
  %166 = vmatpush1.bf16.msra.mxu0 0
  %167 = vmatprep.mubr.bf16.mxu0 0
  %168 = vmatmul.mubr.bf16.gmra.mrb[0].mxu0 %v112
  %v169 = vpop.f32.mrb[0].mxu0
  %v170 = vadd.f32 %v56, %v169
  %v171 = vpop.f32.mrb[0].mxu0
  %v172 = vpop.f32.mrb[0].mxu0
  %v173 = vadd.f32 %v56, %v172
  %v174 = vpop.f32.mrb[0].mxu0
  %175 = vmatprep.mubr.bf16.mxu0 0
  %176 = vmatmul.mubr.bf16.gmra.mrb[0].mxu0 %v115
  %v177 = vpop.f32.mrb[0].mxu0
  %v178 = vadd.f32 %v56, %v177
  %v179 = vpop.f32.mrb[0].mxu0
  %v180 = vpop.f32.mrb[0].mxu0
  %v181 = vadd.f32 %v56, %v180
  %v182 = vpop.f32.mrb[0].mxu0
  %183 = vmatprep.mubr.bf16.mxu0 0
  %184 = vmatmul.mubr.bf16.gmra.mrb[0].mxu0 %v118
  %v185 = vpop.f32.mrb[0].mxu0
  %v186 = vadd.f32 %v56, %v185
  %v187 = vpop.f32.mrb[0].mxu0
  %v188 = vpop.f32.mrb[0].mxu0
  %v189 = vadd.f32 %v56, %v188
  %v190 = vpop.f32.mrb[0].mxu0
  %191 = vmatprep.mubr.bf16.mxu0 0
  %192 = vmatmul.mubr.bf16.gmra.mrb[0].mxu0 %v121
  %v193 = vpop.f32.mrb[0].mxu0
  %v194 = vadd.f32 %v56, %v193
  %v195 = vpop.f32.mrb[0].mxu0
  %v196 = vpop.f32.mrb[0].mxu0
  %v197 = vadd.f32 %v56, %v196
  %v198 = vpop.f32.mrb[0].mxu0
  %199 = vmatprep.mubr.bf16.mxu0 0
  %200 = vmatmul.mubr.bf16.gmra.mrb[0].mxu0 %v124
  %v201 = vpop.f32.mrb[0].mxu0
  %v202 = vadd.f32 %v56, %v201
  %v203 = vpop.f32.mrb[0].mxu0
  %v204 = vpop.f32.mrb[0].mxu0
  %v205 = vadd.f32 %v56, %v204
  %v206 = vpop.f32.mrb[0].mxu0
  %207 = vmatprep.mubr.bf16.mxu0 0
  %208 = vmatmul.mubr.bf16.gmra.mrb[0].mxu0 %v127
  %v209 = vpop.f32.mrb[0].mxu0
  %v210 = vadd.f32 %v56, %v209
  %v211 = vpop.f32.mrb[0].mxu0
  %v212 = vpop.f32.mrb[0].mxu0
  %v213 = vadd.f32 %v56, %v212
  %v214 = vpop.f32.mrb[0].mxu0
  %215 = vmatprep.mubr.bf16.mxu0 0
  %216 = vmatmul.mubr.bf16.gmra.mrb[0].mxu0 %v130
  %v217 = vpop.f32.mrb[0].mxu0
  %v218 = vadd.f32 %v56, %v217
  %v219 = vpop.f32.mrb[0].mxu0
  %v220 = vpop.f32.mrb[0].mxu0
  %v221 = vadd.f32 %v56, %v220
  %v222 = vpop.f32.mrb[0].mxu0
  %223 = vmatprep.mubr.bf16.mxu0 0
  %224 = vmatmul.mubr.bf16.gmra.mrb[0].mxu0 %v133
  %v225 = vpop.f32.mrb[0].mxu0
  %v226 = vadd.f32 %v56, %v225
  %v227 = vpop.f32.mrb[0].mxu0
  %v228 = vpop.f32.mrb[0].mxu0
  %v229 = vadd.f32 %v56, %v228
  %v230 = vpop.f32.mrb[0].mxu0
  %231 = vdwg.mxu0
  %v232 = vmax.f32 %v170, 0.0
  %v233 = vmax.f32 %v173, 0.0
  %v234 = vmax.f32 %v178, 0.0
  %v235 = vmax.f32 %v181, 0.0
  %v236 = vmax.f32 %v186, 0.0
  %v237 = vmax.f32 %v189, 0.0
  %v238 = vmax.f32 %v194, 0.0
  %v239 = vmax.f32 %v197, 0.0
  %v240 = vmax.f32 %v202, 0.0
  %v241 = vmax.f32 %v205, 0.0
  %v242 = vmax.f32 %v210, 0.0
  %v243 = vmax.f32 %v213, 0.0
  %v244 = vmax.f32 %v218, 0.0
  %v245 = vmax.f32 %v221, 0.0
  %v246 = vmax.f32 %v226, 0.0
  %v247 = vmax.f32 %v229, 0.0
  %v248 = vpack.c.bf16 %v233, %v232
  %v249 = vpack.c.bf16 %v235, %v234
  %v250 = vpack.c.bf16 %v237, %v236
  %v251 = vpack.c.bf16 %v239, %v238
  %v252 = vpack.c.bf16 %v241, %v240
  %v253 = vpack.c.bf16 %v243, %v242
  %v254 = vpack.c.bf16 %v245, %v244
  %v255 = vpack.c.bf16 %v247, %v246
  %v256 = vld [vmem:[%s4] sm:$0xf]
  %v257 = vld [vmem:[%s4 + $0x4] sm:$0xf]
  %v258 = vld [vmem:[%s4 + $0x8] sm:$0xf]
  %v259 = vld [vmem:[%s4 + $0xc] sm:$0xf]
  %v260 = vld [vmem:[%s4 + $0x10] sm:$0xf]
  %v261 = vld [vmem:[%s4 + $0x14] sm:$0xf]
  %v262 = vld [vmem:[%s4 + $0x18] sm:$0xf]
  %v263 = vld [vmem:[%s4 + $0x1c] sm:$0xf]
  %v264 = vld [vmem:[%s5] sm:$0x1]
  %v266 = vlaneseq
  %v267 = vshrl.u32 %v266, 7
  %v268 = vsub.s32 0, %v267
  %v269 = vrot.slane %v264, %v268
  %v279 = vunpack.c.l.b16 %v256
  %v280 = vunpack.c.l.b16 %v257
  %v281 = vunpack.c.l.b16 %v258
  %v282 = vunpack.c.l.b16 %v259
  %v283 = vunpack.c.l.b16 %v260
  %v284 = vunpack.c.l.b16 %v261
  %v285 = vunpack.c.l.b16 %v262
  %v286 = vunpack.c.l.b16 %v263
  %v287 = vpack.c.b16 %v280, %v279
  %v288 = vpack.c.b16 %v282, %v281
  %v289 = vpack.c.b16 %v284, %v283
  %v290 = vpack.c.b16 %v286, %v285
  %vm295 = vcmask 523264
  %v297 = vsel %vm295, %v248, 0
  %v300 = vsel %vm295, %v249, 0
  %v303 = vsel %vm295, %v250, 0
  %v306 = vsel %vm295, %v251, 0
  %v309 = vsel %vm295, %v252, 0
  %v312 = vsel %vm295, %v253, 0
  %v315 = vsel %vm295, %v254, 0
  %v318 = vsel %vm295, %v255, 0
  %320 = vmatprep.subr.bf16.mxu0 0
  %321 = vmatpush1.bf16.msra.mxu0 %v287
  %322 = vmatprep.subr.bf16.mxu0 0
  %323 = vmatpush1.bf16.msra.mxu0 %v288
  %324 = vmatprep.subr.bf16.mxu0 0
  %325 = vmatpush1.bf16.msra.mxu0 %v289
  %326 = vmatprep.subr.bf16.mxu0 0
  %327 = vmatpush1.bf16.msra.mxu0 %v290
  %328 = vmatprep.subr.bf16.mxu0 0
  %329 = vmatpush1.bf16.msra.mxu0 0
  %330 = vmatprep.subr.bf16.mxu0 0
  %331 = vmatpush1.bf16.msra.mxu0 0
  %332 = vmatprep.subr.bf16.mxu0 0
  %333 = vmatpush1.bf16.msra.mxu0 0
  %334 = vmatprep.subr.bf16.mxu0 0
  %335 = vmatpush1.bf16.msra.mxu0 0
  %336 = vmatprep.subr.bf16.mxu0 0
  %337 = vmatpush1.bf16.msra.mxu0 0
  %338 = vmatprep.subr.bf16.mxu0 0
  %339 = vmatpush1.bf16.msra.mxu0 0
  %340 = vmatprep.subr.bf16.mxu0 0
  %341 = vmatpush1.bf16.msra.mxu0 0
  %342 = vmatprep.subr.bf16.mxu0 0
  %343 = vmatpush1.bf16.msra.mxu0 0
  %344 = vmatprep.subr.bf16.mxu0 0
  %345 = vmatpush1.bf16.msra.mxu0 0
  %346 = vmatprep.subr.bf16.mxu0 0
  %347 = vmatpush1.bf16.msra.mxu0 0
  %348 = vmatprep.subr.bf16.mxu0 0
  %349 = vmatpush1.bf16.msra.mxu0 0
  %350 = vmatprep.subr.bf16.mxu0 0
  %351 = vmatpush1.bf16.msra.mxu0 0
  %352 = vmatprep.mubr.bf16.mxu0 0
  %353 = vmatmul.mubr.bf16.gmra.mrb[0].mxu0 %v297
  %v354 = vpop.f32.mrb[0].mxu0
  %v355 = vadd.f32 %v269, %v354
  %v356 = vpop.f32.mrb[0].mxu0
  %v357 = vpop.f32.mrb[0].mxu0
  %v358 = vadd.f32 %v269, %v357
  %v359 = vpop.f32.mrb[0].mxu0
  %360 = vmatprep.mubr.bf16.mxu0 0
  %361 = vmatmul.mubr.bf16.gmra.mrb[0].mxu0 %v300
  %v362 = vpop.f32.mrb[0].mxu0
  %v363 = vadd.f32 %v269, %v362
  %v364 = vpop.f32.mrb[0].mxu0
  %v365 = vpop.f32.mrb[0].mxu0
  %v366 = vadd.f32 %v269, %v365
  %v367 = vpop.f32.mrb[0].mxu0
  %368 = vmatprep.mubr.bf16.mxu0 0
  %369 = vmatmul.mubr.bf16.gmra.mrb[0].mxu0 %v303
  %v370 = vpop.f32.mrb[0].mxu0
  %v371 = vadd.f32 %v269, %v370
  %v372 = vpop.f32.mrb[0].mxu0
  %v373 = vpop.f32.mrb[0].mxu0
  %v374 = vadd.f32 %v269, %v373
  %v375 = vpop.f32.mrb[0].mxu0
  %376 = vmatprep.mubr.bf16.mxu0 0
  %377 = vmatmul.mubr.bf16.gmra.mrb[0].mxu0 %v306
  %v378 = vpop.f32.mrb[0].mxu0
  %v379 = vadd.f32 %v269, %v378
  %v380 = vpop.f32.mrb[0].mxu0
  %v381 = vpop.f32.mrb[0].mxu0
  %v382 = vadd.f32 %v269, %v381
  %v383 = vpop.f32.mrb[0].mxu0
  %384 = vmatprep.mubr.bf16.mxu0 0
  %385 = vmatmul.mubr.bf16.gmra.mrb[0].mxu0 %v309
  %v386 = vpop.f32.mrb[0].mxu0
  %v387 = vadd.f32 %v269, %v386
  %v388 = vpop.f32.mrb[0].mxu0
  %v389 = vpop.f32.mrb[0].mxu0
  %v390 = vadd.f32 %v269, %v389
  %v391 = vpop.f32.mrb[0].mxu0
  %392 = vmatprep.mubr.bf16.mxu0 0
  %393 = vmatmul.mubr.bf16.gmra.mrb[0].mxu0 %v312
  %v394 = vpop.f32.mrb[0].mxu0
  %v395 = vadd.f32 %v269, %v394
  %v396 = vpop.f32.mrb[0].mxu0
  %v397 = vpop.f32.mrb[0].mxu0
  %v398 = vadd.f32 %v269, %v397
  %v399 = vpop.f32.mrb[0].mxu0
  %400 = vmatprep.mubr.bf16.mxu0 0
  %401 = vmatmul.mubr.bf16.gmra.mrb[0].mxu0 %v315
  %v402 = vpop.f32.mrb[0].mxu0
  %v403 = vadd.f32 %v269, %v402
  %v404 = vpop.f32.mrb[0].mxu0
  %v405 = vpop.f32.mrb[0].mxu0
  %v406 = vadd.f32 %v269, %v405
  %v407 = vpop.f32.mrb[0].mxu0
  %408 = vmatprep.mubr.bf16.mxu0 0
  %409 = vmatmul.mubr.bf16.gmra.mrb[0].mxu0 %v318
  %v410 = vpop.f32.mrb[0].mxu0
  %v411 = vadd.f32 %v269, %v410
  %v412 = vpop.f32.mrb[0].mxu0
  %v413 = vpop.f32.mrb[0].mxu0
  %v414 = vadd.f32 %v269, %v413
  %v415 = vpop.f32.mrb[0].mxu0
  %416 = vdwg.mxu0
  %v417 = vmax.f32 %v355, 0.0
  %v418 = vmax.f32 %v358, 0.0
  %v419 = vmax.f32 %v363, 0.0
  %v420 = vmax.f32 %v366, 0.0
  %v421 = vmax.f32 %v371, 0.0
  %v422 = vmax.f32 %v374, 0.0
  %v423 = vmax.f32 %v379, 0.0
  %v424 = vmax.f32 %v382, 0.0
  %v425 = vmax.f32 %v387, 0.0
  %v426 = vmax.f32 %v390, 0.0
  %v427 = vmax.f32 %v395, 0.0
  %v428 = vmax.f32 %v398, 0.0
  %v429 = vmax.f32 %v403, 0.0
  %v430 = vmax.f32 %v406, 0.0
  %v431 = vmax.f32 %v411, 0.0
  %v432 = vmax.f32 %v414, 0.0
  %v433 = vld [vmem:[%s1] sm:$0xf]
  %v434 = vld [vmem:[%s1 + $0x4] sm:$0xf]
  %v435 = vld [vmem:[%s1 + $0x8] sm:$0xf]
  %v436 = vld [vmem:[%s1 + $0xc] sm:$0xf]
  %v437 = vld [vmem:[%s1 + $0x10] sm:$0xf]
  %v438 = vld [vmem:[%s1 + $0x14] sm:$0xf]
  %v439 = vld [vmem:[%s1 + $0x18] sm:$0xf]
  %v440 = vld [vmem:[%s1 + $0x1c] sm:$0xf]
  %v441 = vld [vmem:[%s1 + $0x20] sm:$0xf]
  %v442 = vld [vmem:[%s1 + $0x24] sm:$0xf]
  %v443 = vld [vmem:[%s1 + $0x28] sm:$0xf]
  %v444 = vld [vmem:[%s1 + $0x2c] sm:$0xf]
  %v445 = vld [vmem:[%s1 + $0x30] sm:$0xf]
  %v446 = vld [vmem:[%s1 + $0x34] sm:$0xf]
  %v447 = vld [vmem:[%s1 + $0x38] sm:$0xf]
  %v448 = vld [vmem:[%s1 + $0x3c] sm:$0xf]
  %v465 = vunpack.c.l.b16 %v433
  %v466 = vunpack.c.l.b16 %v434
  %v467 = vunpack.c.l.b16 %v435
  %v468 = vunpack.c.l.b16 %v436
  %v469 = vunpack.c.l.b16 %v437
  %v470 = vunpack.c.l.b16 %v438
  %v471 = vunpack.c.l.b16 %v439
  %v472 = vunpack.c.l.b16 %v440
  %v473 = vunpack.c.l.b16 %v441
  %v474 = vunpack.c.l.b16 %v442
  %v475 = vunpack.c.l.b16 %v443
  %v476 = vunpack.c.l.b16 %v444
  %v477 = vunpack.c.l.b16 %v445
  %v478 = vunpack.c.l.b16 %v446
  %v479 = vunpack.c.l.b16 %v447
  %v480 = vunpack.c.l.b16 %v448
  %v481 = vpack.c.b16 %v466, %v465
  %v482 = vpack.c.b16 %v468, %v467
  %v483 = vpack.c.b16 %v470, %v469
  %v484 = vpack.c.b16 %v472, %v471
  %v485 = vpack.c.b16 %v474, %v473
  %v486 = vpack.c.b16 %v476, %v475
  %v487 = vpack.c.b16 %v478, %v477
  %v488 = vpack.c.b16 %v480, %v479
  %v490 = vsel %vm110, %v481, 0
  %v493 = vsel %vm110, %v482, 0
  %v496 = vsel %vm110, %v483, 0
  %v499 = vsel %vm110, %v484, 0
  %v502 = vsel %vm110, %v485, 0
  %v505 = vsel %vm110, %v486, 0
  %v508 = vsel %vm110, %v487, 0
  %v511 = vsel %vm110, %v488, 0
  %513 = vmatprep.subr.bf16.mxu0 0
  %514 = vmatpush1.bf16.msra.mxu0 %v106
  %515 = vmatprep.subr.bf16.mxu0 0
  %516 = vmatpush1.bf16.msra.mxu0 %v107
  %517 = vmatprep.subr.bf16.mxu0 0
  %518 = vmatpush1.bf16.msra.mxu0 0
  %519 = vmatprep.subr.bf16.mxu0 0
  %520 = vmatpush1.bf16.msra.mxu0 0
  %521 = vmatprep.subr.bf16.mxu0 0
  %522 = vmatpush1.bf16.msra.mxu0 0
  %523 = vmatprep.subr.bf16.mxu0 0
  %524 = vmatpush1.bf16.msra.mxu0 0
  %525 = vmatprep.subr.bf16.mxu0 0
  %526 = vmatpush1.bf16.msra.mxu0 0
  %527 = vmatprep.subr.bf16.mxu0 0
  %528 = vmatpush1.bf16.msra.mxu0 0
  %529 = vmatprep.subr.bf16.mxu0 0
  %530 = vmatpush1.bf16.msra.mxu0 0
  %531 = vmatprep.subr.bf16.mxu0 0
  %532 = vmatpush1.bf16.msra.mxu0 0
  %533 = vmatprep.subr.bf16.mxu0 0
  %534 = vmatpush1.bf16.msra.mxu0 0
  %535 = vmatprep.subr.bf16.mxu0 0
  %536 = vmatpush1.bf16.msra.mxu0 0
  %537 = vmatprep.subr.bf16.mxu0 0
  %538 = vmatpush1.bf16.msra.mxu0 0
  %539 = vmatprep.subr.bf16.mxu0 0
  %540 = vmatpush1.bf16.msra.mxu0 0
  %541 = vmatprep.subr.bf16.mxu0 0
  %542 = vmatpush1.bf16.msra.mxu0 0
  %543 = vmatprep.subr.bf16.mxu0 0
  %544 = vmatpush1.bf16.msra.mxu0 0
  %545 = vmatprep.mubr.bf16.mxu0 0
  %546 = vmatmul.mubr.bf16.gmra.mrb[0].mxu0 %v490
  %v547 = vpop.f32.mrb[0].mxu0
  %v548 = vadd.f32 %v56, %v547
  %v549 = vpop.f32.mrb[0].mxu0
  %v550 = vpop.f32.mrb[0].mxu0
  %v551 = vadd.f32 %v56, %v550
  %v552 = vpop.f32.mrb[0].mxu0
  %553 = vmatprep.mubr.bf16.mxu0 0
  %554 = vmatmul.mubr.bf16.gmra.mrb[0].mxu0 %v493
  %v555 = vpop.f32.mrb[0].mxu0
  %v556 = vadd.f32 %v56, %v555
  %v557 = vpop.f32.mrb[0].mxu0
  %v558 = vpop.f32.mrb[0].mxu0
  %v559 = vadd.f32 %v56, %v558
  %v560 = vpop.f32.mrb[0].mxu0
  %561 = vmatprep.mubr.bf16.mxu0 0
  %562 = vmatmul.mubr.bf16.gmra.mrb[0].mxu0 %v496
  %v563 = vpop.f32.mrb[0].mxu0
  %v564 = vadd.f32 %v56, %v563
  %v565 = vpop.f32.mrb[0].mxu0
  %v566 = vpop.f32.mrb[0].mxu0
  %v567 = vadd.f32 %v56, %v566
  %v568 = vpop.f32.mrb[0].mxu0
  %569 = vmatprep.mubr.bf16.mxu0 0
  %570 = vmatmul.mubr.bf16.gmra.mrb[0].mxu0 %v499
  %v571 = vpop.f32.mrb[0].mxu0
  %v572 = vadd.f32 %v56, %v571
  %v573 = vpop.f32.mrb[0].mxu0
  %v574 = vpop.f32.mrb[0].mxu0
  %v575 = vadd.f32 %v56, %v574
  %v576 = vpop.f32.mrb[0].mxu0
  %577 = vmatprep.mubr.bf16.mxu0 0
  %578 = vmatmul.mubr.bf16.gmra.mrb[0].mxu0 %v502
  %v579 = vpop.f32.mrb[0].mxu0
  %v580 = vadd.f32 %v56, %v579
  %v581 = vpop.f32.mrb[0].mxu0
  %v582 = vpop.f32.mrb[0].mxu0
  %v583 = vadd.f32 %v56, %v582
  %v584 = vpop.f32.mrb[0].mxu0
  %585 = vmatprep.mubr.bf16.mxu0 0
  %586 = vmatmul.mubr.bf16.gmra.mrb[0].mxu0 %v505
  %v587 = vpop.f32.mrb[0].mxu0
  %v588 = vadd.f32 %v56, %v587
  %v589 = vpop.f32.mrb[0].mxu0
  %v590 = vpop.f32.mrb[0].mxu0
  %v591 = vadd.f32 %v56, %v590
  %v592 = vpop.f32.mrb[0].mxu0
  %593 = vmatprep.mubr.bf16.mxu0 0
  %594 = vmatmul.mubr.bf16.gmra.mrb[0].mxu0 %v508
  %v595 = vpop.f32.mrb[0].mxu0
  %v596 = vadd.f32 %v56, %v595
  %v597 = vpop.f32.mrb[0].mxu0
  %v598 = vpop.f32.mrb[0].mxu0
  %v599 = vadd.f32 %v56, %v598
  %v600 = vpop.f32.mrb[0].mxu0
  %601 = vmatprep.mubr.bf16.mxu0 0
  %602 = vmatmul.mubr.bf16.gmra.mrb[0].mxu0 %v511
  %v603 = vpop.f32.mrb[0].mxu0
  %v604 = vadd.f32 %v56, %v603
  %v605 = vpop.f32.mrb[0].mxu0
  %v606 = vpop.f32.mrb[0].mxu0
  %v607 = vadd.f32 %v56, %v606
  %v608 = vpop.f32.mrb[0].mxu0
  %609 = vdwg.mxu0
  %v610 = vmax.f32 %v548, 0.0
  %v611 = vmax.f32 %v551, 0.0
  %v612 = vmax.f32 %v556, 0.0
  %v613 = vmax.f32 %v559, 0.0
  %v614 = vmax.f32 %v564, 0.0
  %v615 = vmax.f32 %v567, 0.0
  %v616 = vmax.f32 %v572, 0.0
  %v617 = vmax.f32 %v575, 0.0
  %v618 = vmax.f32 %v580, 0.0
  %v619 = vmax.f32 %v583, 0.0
  %v620 = vmax.f32 %v588, 0.0
  %v621 = vmax.f32 %v591, 0.0
  %v622 = vmax.f32 %v596, 0.0
  %v623 = vmax.f32 %v599, 0.0
  %v624 = vmax.f32 %v604, 0.0
  %v625 = vmax.f32 %v607, 0.0
  %v626 = vpack.c.bf16 %v611, %v610
  %v627 = vpack.c.bf16 %v613, %v612
  %v628 = vpack.c.bf16 %v615, %v614
  %v629 = vpack.c.bf16 %v617, %v616
  %v630 = vpack.c.bf16 %v619, %v618
  %v631 = vpack.c.bf16 %v621, %v620
  %v632 = vpack.c.bf16 %v623, %v622
  %v633 = vpack.c.bf16 %v625, %v624
  %v635 = vsel %vm295, %v626, 0
  %v638 = vsel %vm295, %v627, 0
  %v641 = vsel %vm295, %v628, 0
  %v644 = vsel %vm295, %v629, 0
  %v647 = vsel %vm295, %v630, 0
  %v650 = vsel %vm295, %v631, 0
  %v653 = vsel %vm295, %v632, 0
  %v656 = vsel %vm295, %v633, 0
  %658 = vmatprep.subr.bf16.mxu0 0
  %659 = vmatpush1.bf16.msra.mxu0 %v287
  %660 = vmatprep.subr.bf16.mxu0 0
  %661 = vmatpush1.bf16.msra.mxu0 %v288
  %662 = vmatprep.subr.bf16.mxu0 0
  %663 = vmatpush1.bf16.msra.mxu0 %v289
  %664 = vmatprep.subr.bf16.mxu0 0
  %665 = vmatpush1.bf16.msra.mxu0 %v290
  %666 = vmatprep.subr.bf16.mxu0 0
  %667 = vmatpush1.bf16.msra.mxu0 0
  %668 = vmatprep.subr.bf16.mxu0 0
  %669 = vmatpush1.bf16.msra.mxu0 0
  %670 = vmatprep.subr.bf16.mxu0 0
  %671 = vmatpush1.bf16.msra.mxu0 0
  %672 = vmatprep.subr.bf16.mxu0 0
  %673 = vmatpush1.bf16.msra.mxu0 0
  %674 = vmatprep.subr.bf16.mxu0 0
  %675 = vmatpush1.bf16.msra.mxu0 0
  %676 = vmatprep.subr.bf16.mxu0 0
  %677 = vmatpush1.bf16.msra.mxu0 0
  %678 = vmatprep.subr.bf16.mxu0 0
  %679 = vmatpush1.bf16.msra.mxu0 0
  %680 = vmatprep.subr.bf16.mxu0 0
  %681 = vmatpush1.bf16.msra.mxu0 0
  %682 = vmatprep.subr.bf16.mxu0 0
  %683 = vmatpush1.bf16.msra.mxu0 0
  %684 = vmatprep.subr.bf16.mxu0 0
  %685 = vmatpush1.bf16.msra.mxu0 0
  %686 = vmatprep.subr.bf16.mxu0 0
  %687 = vmatpush1.bf16.msra.mxu0 0
  %688 = vmatprep.subr.bf16.mxu0 0
  %689 = vmatpush1.bf16.msra.mxu0 0
  %690 = vmatprep.mubr.bf16.mxu0 0
  %691 = vmatmul.mubr.bf16.gmra.mrb[0].mxu0 %v635
  %v692 = vpop.f32.mrb[0].mxu0
  %v693 = vadd.f32 %v269, %v692
  %v694 = vpop.f32.mrb[0].mxu0
  %v695 = vpop.f32.mrb[0].mxu0
  %v696 = vadd.f32 %v269, %v695
  %v697 = vpop.f32.mrb[0].mxu0
  %698 = vmatprep.mubr.bf16.mxu0 0
  %699 = vmatmul.mubr.bf16.gmra.mrb[0].mxu0 %v638
  %v700 = vpop.f32.mrb[0].mxu0
  %v701 = vadd.f32 %v269, %v700
  %v702 = vpop.f32.mrb[0].mxu0
  %v703 = vpop.f32.mrb[0].mxu0
  %v704 = vadd.f32 %v269, %v703
  %v705 = vpop.f32.mrb[0].mxu0
  %706 = vmatprep.mubr.bf16.mxu0 0
  %707 = vmatmul.mubr.bf16.gmra.mrb[0].mxu0 %v641
  %v708 = vpop.f32.mrb[0].mxu0
  %v709 = vadd.f32 %v269, %v708
  %v710 = vpop.f32.mrb[0].mxu0
  %v711 = vpop.f32.mrb[0].mxu0
  %v712 = vadd.f32 %v269, %v711
  %v713 = vpop.f32.mrb[0].mxu0
  %714 = vmatprep.mubr.bf16.mxu0 0
  %715 = vmatmul.mubr.bf16.gmra.mrb[0].mxu0 %v644
  %v716 = vpop.f32.mrb[0].mxu0
  %v717 = vadd.f32 %v269, %v716
  %v718 = vpop.f32.mrb[0].mxu0
  %v719 = vpop.f32.mrb[0].mxu0
  %v720 = vadd.f32 %v269, %v719
  %v721 = vpop.f32.mrb[0].mxu0
  %722 = vmatprep.mubr.bf16.mxu0 0
  %723 = vmatmul.mubr.bf16.gmra.mrb[0].mxu0 %v647
  %v724 = vpop.f32.mrb[0].mxu0
  %v725 = vadd.f32 %v269, %v724
  %v726 = vpop.f32.mrb[0].mxu0
  %v727 = vpop.f32.mrb[0].mxu0
  %v728 = vadd.f32 %v269, %v727
  %v729 = vpop.f32.mrb[0].mxu0
  %730 = vmatprep.mubr.bf16.mxu0 0
  %731 = vmatmul.mubr.bf16.gmra.mrb[0].mxu0 %v650
  %v732 = vpop.f32.mrb[0].mxu0
  %v733 = vadd.f32 %v269, %v732
  %v734 = vpop.f32.mrb[0].mxu0
  %v735 = vpop.f32.mrb[0].mxu0
  %v736 = vadd.f32 %v269, %v735
  %v737 = vpop.f32.mrb[0].mxu0
  %738 = vmatprep.mubr.bf16.mxu0 0
  %739 = vmatmul.mubr.bf16.gmra.mrb[0].mxu0 %v653
  %v740 = vpop.f32.mrb[0].mxu0
  %v741 = vadd.f32 %v269, %v740
  %v742 = vpop.f32.mrb[0].mxu0
  %v743 = vpop.f32.mrb[0].mxu0
  %v744 = vadd.f32 %v269, %v743
  %v745 = vpop.f32.mrb[0].mxu0
  %746 = vmatprep.mubr.bf16.mxu0 0
  %747 = vmatmul.mubr.bf16.gmra.mrb[0].mxu0 %v656
  %v748 = vpop.f32.mrb[0].mxu0
  %v749 = vadd.f32 %v269, %v748
  %v750 = vpop.f32.mrb[0].mxu0
  %v751 = vpop.f32.mrb[0].mxu0
  %v752 = vadd.f32 %v269, %v751
  %v753 = vpop.f32.mrb[0].mxu0
  %754 = vdwg.mxu0
  %v755 = vmax.f32 %v693, 0.0
  %v756 = vmax.f32 %v696, 0.0
  %v757 = vmax.f32 %v701, 0.0
  %v758 = vmax.f32 %v704, 0.0
  %v759 = vmax.f32 %v709, 0.0
  %v760 = vmax.f32 %v712, 0.0
  %v761 = vmax.f32 %v717, 0.0
  %v762 = vmax.f32 %v720, 0.0
  %v763 = vmax.f32 %v725, 0.0
  %v764 = vmax.f32 %v728, 0.0
  %v765 = vmax.f32 %v733, 0.0
  %v766 = vmax.f32 %v736, 0.0
  %v767 = vmax.f32 %v741, 0.0
  %v768 = vmax.f32 %v744, 0.0
  %v769 = vmax.f32 %v749, 0.0
  %v770 = vmax.f32 %v752, 0.0
  %v771 = vsub.f32 %v417, %v755
  %v772 = vsub.f32 %v418, %v756
  %v773 = vsub.f32 %v419, %v757
  %v774 = vsub.f32 %v420, %v758
  %v775 = vsub.f32 %v421, %v759
  %v776 = vsub.f32 %v422, %v760
  %v777 = vsub.f32 %v423, %v761
  %v778 = vsub.f32 %v424, %v762
  %v779 = vsub.f32 %v425, %v763
  %v780 = vsub.f32 %v426, %v764
  %v781 = vsub.f32 %v427, %v765
  %v782 = vsub.f32 %v428, %v766
  %v783 = vsub.f32 %v429, %v767
  %v784 = vsub.f32 %v430, %v768
  %v785 = vsub.f32 %v431, %v769
  %v786 = vsub.f32 %v432, %v770
  %v787 = vand.u32 2147483647, %v771
  %v788 = vand.u32 2147483647, %v772
  %v789 = vand.u32 2147483647, %v773
  %v790 = vand.u32 2147483647, %v774
  %v791 = vand.u32 2147483647, %v775
  %v792 = vand.u32 2147483647, %v776
  %v793 = vand.u32 2147483647, %v777
  %v794 = vand.u32 2147483647, %v778
  %v795 = vand.u32 2147483647, %v779
  %v796 = vand.u32 2147483647, %v780
  %v797 = vand.u32 2147483647, %v781
  %v798 = vand.u32 2147483647, %v782
  %v799 = vand.u32 2147483647, %v783
  %v800 = vand.u32 2147483647, %v784
  %v801 = vand.u32 2147483647, %v785
  %v802 = vand.u32 2147483647, %v786
  %v803 = vld [vmem:[%s6] sm:$0x1]
  %v805 = vlaneseq
  %v806 = vshrl.u32 %v805, 7
  %v807 = vsub.s32 0, %v806
  %v808 = vrot.slane %v803, %v807
  %v810 = vmul.f32 %v787, %v808
  %v811 = vmul.f32 %v788, %v808
  %v812 = vmul.f32 %v789, %v808
  %v813 = vmul.f32 %v790, %v808
  %v814 = vmul.f32 %v791, %v808
  %v815 = vmul.f32 %v792, %v808
  %v816 = vmul.f32 %v793, %v808
  %v817 = vmul.f32 %v794, %v808
  %v818 = vmul.f32 %v795, %v808
  %v819 = vmul.f32 %v796, %v808
  %v820 = vmul.f32 %v797, %v808
  %v821 = vmul.f32 %v798, %v808
  %v822 = vmul.f32 %v799, %v808
  %v823 = vmul.f32 %v800, %v808
  %v824 = vmul.f32 %v801, %v808
  %v825 = vmul.f32 %v802, %v808
  %v826 = vsel %vm110, %v810, 0.0
  %827 = vadd.xlane.f32.xlu0 %v826
  %v828 = vpop.xlane.xlu0 %827
  %v829 = vsel %vm110, %v811, 0.0
  %830 = vadd.xlane.f32.xlu0 %v829
  %v831 = vpop.xlane.xlu0 %830
  %v832 = vsel %vm110, %v812, 0.0
  %833 = vadd.xlane.f32.xlu0 %v832
  %v834 = vpop.xlane.xlu0 %833
  %v835 = vsel %vm110, %v813, 0.0
  %836 = vadd.xlane.f32.xlu0 %v835
  %v837 = vpop.xlane.xlu0 %836
  %v838 = vsel %vm110, %v814, 0.0
  %839 = vadd.xlane.f32.xlu0 %v838
  %v840 = vpop.xlane.xlu0 %839
  %v841 = vsel %vm110, %v815, 0.0
  %842 = vadd.xlane.f32.xlu0 %v841
  %v843 = vpop.xlane.xlu0 %842
  %v844 = vsel %vm110, %v816, 0.0
  %845 = vadd.xlane.f32.xlu0 %v844
  %v846 = vpop.xlane.xlu0 %845
  %v847 = vsel %vm110, %v817, 0.0
  %848 = vadd.xlane.f32.xlu0 %v847
  %v849 = vpop.xlane.xlu0 %848
  %v850 = vsel %vm110, %v818, 0.0
  %851 = vadd.xlane.f32.xlu0 %v850
  %v852 = vpop.xlane.xlu0 %851
  %v853 = vsel %vm110, %v819, 0.0
  %854 = vadd.xlane.f32.xlu0 %v853
  %v855 = vpop.xlane.xlu0 %854
  %v856 = vsel %vm110, %v820, 0.0
  %857 = vadd.xlane.f32.xlu0 %v856
  %v858 = vpop.xlane.xlu0 %857
  %v859 = vsel %vm110, %v821, 0.0
  %860 = vadd.xlane.f32.xlu0 %v859
  %v861 = vpop.xlane.xlu0 %860
  %v862 = vsel %vm110, %v822, 0.0
  %863 = vadd.xlane.f32.xlu0 %v862
  %v864 = vpop.xlane.xlu0 %863
  %v865 = vsel %vm110, %v823, 0.0
  %866 = vadd.xlane.f32.xlu0 %v865
  %v867 = vpop.xlane.xlu0 %866
  %v868 = vsel %vm110, %v824, 0.0
  %869 = vadd.xlane.f32.xlu0 %v868
  %v870 = vpop.xlane.xlu0 %869
  %v871 = vsel %vm110, %v825, 0.0
  %872 = vadd.xlane.f32.xlu0 %v871
  %v873 = vpop.xlane.xlu0 %872
  %s874 = sld [smem:[#allocation2]]
  %v875 = vstv %s874
  %v876 = vadd.f32 %v828, %v875
  %v877 = vadd.f32 %v831, %v875
  %v878 = vadd.f32 %v834, %v875
  %v879 = vadd.f32 %v837, %v875
  %v880 = vadd.f32 %v840, %v875
  %v881 = vadd.f32 %v843, %v875
  %v882 = vadd.f32 %v846, %v875
  %v883 = vadd.f32 %v849, %v875
  %v884 = vadd.f32 %v852, %v875
  %v885 = vadd.f32 %v855, %v875
  %v886 = vadd.f32 %v858, %v875
  %v887 = vadd.f32 %v861, %v875
  %v888 = vadd.f32 %v864, %v875
  %v889 = vadd.f32 %v867, %v875
  %v890 = vadd.f32 %v870, %v875
  %v891 = vadd.f32 %v873, %v875
  %v892 = vxor.u32 %v876, 2147483648
  %v893 = vxor.u32 %v877, 2147483648
  %v894 = vxor.u32 %v878, 2147483648
  %v895 = vxor.u32 %v879, 2147483648
  %v896 = vxor.u32 %v880, 2147483648
  %v897 = vxor.u32 %v881, 2147483648
  %v898 = vxor.u32 %v882, 2147483648
  %v899 = vxor.u32 %v883, 2147483648
  %v900 = vxor.u32 %v884, 2147483648
  %v901 = vxor.u32 %v885, 2147483648
  %v902 = vxor.u32 %v886, 2147483648
  %v903 = vxor.u32 %v887, 2147483648
  %v904 = vxor.u32 %v888, 2147483648
  %v905 = vxor.u32 %v889, 2147483648
  %v906 = vxor.u32 %v890, 2147483648
  %v907 = vxor.u32 %v891, 2147483648
  %v908 = vmul.f32 %v892, 1.442695
  %v909 = vpow.pop %v908
  %v910 = vmul.f32 %v893, 1.442695
  %v911 = vpow.pop %v910
  %v912 = vmul.f32 %v894, 1.442695
  %v913 = vpow.pop %v912
  %v914 = vmul.f32 %v895, 1.442695
  %v915 = vpow.pop %v914
  %v916 = vmul.f32 %v896, 1.442695
  %v917 = vpow.pop %v916
  %v918 = vmul.f32 %v897, 1.442695
  %v919 = vpow.pop %v918
  %v920 = vmul.f32 %v898, 1.442695
  %v921 = vpow.pop %v920
  %v922 = vmul.f32 %v899, 1.442695
  %v923 = vpow.pop %v922
  %v924 = vmul.f32 %v900, 1.442695
  %v925 = vpow.pop %v924
  %v926 = vmul.f32 %v901, 1.442695
  %v927 = vpow.pop %v926
  %v928 = vmul.f32 %v902, 1.442695
  %v929 = vpow.pop %v928
  %v930 = vmul.f32 %v903, 1.442695
  %v931 = vpow.pop %v930
  %v932 = vmul.f32 %v904, 1.442695
  %v933 = vpow.pop %v932
  %v934 = vmul.f32 %v905, 1.442695
  %v935 = vpow.pop %v934
  %v936 = vmul.f32 %v906, 1.442695
  %v937 = vpow.pop %v936
  %v938 = vmul.f32 %v907, 1.442695
  %v939 = vpow.pop %v938
  %v940 = vadd.f32 %v909, 1.0
  %v941 = vadd.f32 %v911, 1.0
  %v942 = vadd.f32 %v913, 1.0
  %v943 = vadd.f32 %v915, 1.0
  %v944 = vadd.f32 %v917, 1.0
  %v945 = vadd.f32 %v919, 1.0
  %v946 = vadd.f32 %v921, 1.0
  %v947 = vadd.f32 %v923, 1.0
  %v948 = vadd.f32 %v925, 1.0
  %v949 = vadd.f32 %v927, 1.0
  %v950 = vadd.f32 %v929, 1.0
  %v951 = vadd.f32 %v931, 1.0
  %v952 = vadd.f32 %v933, 1.0
  %v953 = vadd.f32 %v935, 1.0
  %v954 = vadd.f32 %v937, 1.0
  %v955 = vadd.f32 %v939, 1.0
  %v956 = vrcp.pop %v940
  %v957 = vmul.f32 1.0, %v956
  %v958 = vrcp.pop %v941
  %v959 = vmul.f32 1.0, %v958
  %v960 = vrcp.pop %v942
  %v961 = vmul.f32 1.0, %v960
  %v962 = vrcp.pop %v943
  %v963 = vmul.f32 1.0, %v962
  %v964 = vrcp.pop %v944
  %v965 = vmul.f32 1.0, %v964
  %v966 = vrcp.pop %v945
  %v967 = vmul.f32 1.0, %v966
  %v968 = vrcp.pop %v946
  %v969 = vmul.f32 1.0, %v968
  %v970 = vrcp.pop %v947
  %v971 = vmul.f32 1.0, %v970
  %v972 = vrcp.pop %v948
  %v973 = vmul.f32 1.0, %v972
  %v974 = vrcp.pop %v949
  %v975 = vmul.f32 1.0, %v974
  %v976 = vrcp.pop %v950
  %v977 = vmul.f32 1.0, %v976
  %v978 = vrcp.pop %v951
  %v979 = vmul.f32 1.0, %v978
  %v980 = vrcp.pop %v952
  %v981 = vmul.f32 1.0, %v980
  %v982 = vrcp.pop %v953
  %v983 = vmul.f32 1.0, %v982
  %v984 = vrcp.pop %v954
  %v985 = vmul.f32 1.0, %v984
  %v986 = vrcp.pop %v955
  %v987 = vmul.f32 1.0, %v986
  %vm988 = vcmask 7168
  %989 = vst.msk [vmem:[%s8] sm:$0xff] %vm988, %v957
  %990 = vst.msk [vmem:[%s8 + $0x8] sm:$0xff] %vm988, %v959
  %991 = vst.msk [vmem:[%s8 + $0x10] sm:$0xff] %vm988, %v961
  %992 = vst.msk [vmem:[%s8 + $0x18] sm:$0xff] %vm988, %v963
  %993 = vst.msk [vmem:[%s8 + $0x20] sm:$0xff] %vm988, %v965
  %994 = vst.msk [vmem:[%s8 + $0x28] sm:$0xff] %vm988, %v967
  %995 = vst.msk [vmem:[%s8 + $0x30] sm:$0xff] %vm988, %v969
  %996 = vst.msk [vmem:[%s8 + $0x38] sm:$0xff] %vm988, %v971
  %997 = vst.msk [vmem:[%s8 + $0x40] sm:$0xff] %vm988, %v973
  %998 = vst.msk [vmem:[%s8 + $0x48] sm:$0xff] %vm988, %v975
  %999 = vst.msk [vmem:[%s8 + $0x50] sm:$0xff] %vm988, %v977
  %1000 = vst.msk [vmem:[%s8 + $0x58] sm:$0xff] %vm988, %v979
  %1001 = vst.msk [vmem:[%s8 + $0x60] sm:$0xff] %vm988, %v981
  %1002 = vst.msk [vmem:[%s8 + $0x68] sm:$0xff] %vm988, %v983
  %1003 = vst.msk [vmem:[%s8 + $0x70] sm:$0xff] %vm988, %v985
  %1004 = vst.msk [vmem:[%s8 + $0x78] sm:$0xff] %vm988, %v987
  // Predicated region
  $region34: #{tpu_custom_call.1} parent=0 // pred_check
    _
  $region35: #{tpu_custom_call.1} parent=0 // pred_check_branch
    %1006 = sbr.rel (0) target = $region37
  $region36: #{tpu_custom_call.1} parent=0 // pred_region
    _
  $region37: #{tpu_custom_call.1} parent=0 // pred_fallthru
    _
  // Predicated region
  $region38: #{tpu_custom_call.1} parent=0 // pred_check
    _
  $region39: #{tpu_custom_call.1} parent=0 // pred_check_branch
    %1008 = sbr.rel (0) target = $region41
  $region40: #{tpu_custom_call.1} parent=0 // pred_region
    _
  $region41: #{tpu_custom_call.1} parent=0 // pred_fallthru
    _

</llo_original>
